<compile_context>
chip_gen: v6e
topology: v6e:2x2x1
jax: 0.10.0
libtpu: 0.0.40
codegen_flags: <defaults>
</compile_context>

<pallas_src>
import jax
import jax.numpy as jnp
from jax.experimental import pallas as pl
from jax.experimental.pallas import tpu as pltpu


def hybrid_expectation_kernel(x_ref, out_ref):
    """out = (1 + sin(theta)) / 2, theta = x[0, 0] (mirrors `input[0]`)."""
    theta = x_ref[0, 0]                                    # scalar f32 read from SMEM
    theta_v = jnp.full((1, 1), theta, dtype=jnp.float32)   # splat so sin runs on the EUP
    out_ref[...] = 0.5 * (1.0 + jnp.sin(theta_v))


def hybrid_forward(x: jax.Array) -> jax.Array:
    """Forward pass of the Hybrid layer.

    Args:
      x: (B, N) float32 array of RY angles; only x[0, 0] is consumed
         (mirrors `input[0]` feeding the 1-qubit circuit).
    Returns:
      (1, 1) float32 array: expectation of the measured bit value, matching
      torch.tensor([expectation_z]).
    """
    x = x.astype(jnp.float32)
    bytes_accessed = int(x.size) * 4 + 4  # whole input to SMEM + one f32 out

    return pl.pallas_call(
        hybrid_expectation_kernel,
        out_shape=jax.ShapeDtypeStruct((1, 1), jnp.float32),
        # Whole (small) input lands in SMEM: scalar-indexed read, no padded
        # vector DMA, no masked vector load, no wrapper-side slice op.
        in_specs=[pl.BlockSpec(memory_space=pltpu.SMEM)],
        out_specs=pl.BlockSpec(memory_space=pltpu.VMEM),
        cost_estimate=pl.CostEstimate(
            flops=2, transcendentals=1, bytes_accessed=bytes_accessed
        ),
    )(x)


def hybrid_forward_ref(x: jax.Array) -> jax.Array:
    """Pure-JAX reference of the same analytic expectation."""
    x = x.astype(jnp.float32)
    return 0.5 * (1.0 + jnp.sin(x[0:1, 0:1]))


if __name__ == "__main__":
    # Deterministic parameters of the module (shift is only used in backward,
    # n_qubits=1, shots -> analytic limit). No learned weights in this module.
    shift = jnp.pi / 2.0  # noqa: F841  (kept for fidelity with __init__; unused in fwd)

    key = jax.random.PRNGKey(0)
    # Small batch of 2 circuit inputs, each with a single theta (B=2, N=1),
    # consistent with the tutorial usage of this layer.
    x = jax.random.uniform(
        key, (2, 1), dtype=jnp.float32, minval=-jnp.pi, maxval=jnp.pi
    )

    out = jax.block_until_ready(hybrid_forward(x))
    ref = hybrid_forward_ref(x)

    assert out.shape == (1, 1), out.shape
    assert jnp.allclose(out, ref, atol=1e-6, rtol=1e-6), (out, ref)

    print("KERNEL_OK")
</pallas_src>

<mosaic_0001>
module attributes {stable_mosaic.version = 11 : i64} {
  func.func @hybrid_expectation_kernel(%arg0: memref<2x1xf32, #tpu.memory_space<smem>>, %arg1: memref<1x1xf32, #tpu.memory_space<vmem>>) attributes {dimension_semantics = [], scalar_prefetch = 0 : i64, scratch_operands = 0 : i64, tpu.core_type = #tpu.core_type<tc>} {
    %c0 = arith.constant 0 : index
    %c0_0 = arith.constant 0 : index
    %0 = memref.load %arg0[%c0, %c0_0] : memref<2x1xf32, #tpu.memory_space<smem>>
    %1 = vector.broadcast %0 : f32 to vector<1x1xf32>
    %2 = math.sin %1 : vector<1x1xf32>
    %cst = arith.constant 1.000000e+00 : f32
    %3 = vector.broadcast %cst : f32 to vector<1x1xf32>
    %4 = arith.addf %3, %2 : vector<1x1xf32>
    %cst_1 = arith.constant 5.000000e-01 : f32
    %5 = vector.broadcast %cst_1 : f32 to vector<1x1xf32>
    %6 = arith.mulf %5, %4 : vector<1x1xf32>
    %c0_2 = arith.constant 0 : index
    %c0_3 = arith.constant 0 : index
    %7 = vector.load %arg1[%c0_2, %c0_3] : memref<1x1xf32, #tpu.memory_space<vmem>>, vector<1x1xf32>
    tpu.vector_store %arg1[%c0_2, %c0_3], %6 {strides = array<i32>} : memref<1x1xf32, #tpu.memory_space<vmem>>, vector<1x1xf32>,
    return
  }
}

</mosaic_0001>

<llo_original>
// kernel: tpu_custom_call.1
$region0: #{tpu_custom_call.1}
  #allocation0 [shape = 'u32[]', space=smem, size = 0x4, offset = 0x4, fixed_abs, tag = 'smem constant byte address 0x4 - core index']
  #allocation1 [shape = 'u32[144,128]{1,0:T(1,128)}', space=vmem, size = 0x12000, scoped, tag = 'internal scratch']
  %s0 = inlined_call_operand.vmem [shape: f32[2,1], index: 0, kind: input, shape index: {}]
  %s1 = inlined_call_operand.hbm [shape: f32[1,1], index: 1, kind: output, shape index: {}]
  %s2 = sld [smem:[#allocation0]]
  $region18: #{tpu_custom_call.1} parent=0
    _
  %s4 = ssub.s32 1, %s2
  %s5 = scalar_select 0, %s4, %s2
  $region1: #{tpu_custom_call.1} parent=0
    #allocation2 [shape = 'u8[1024]{0}', space=smem, size = 0x400, scoped, tag = 'input window, operand 0, single buffered']
    #allocation3 [shape = 's32[1]{0}', space=sflag, size = 0x4, scoped, tag = 'scoped memory for tpu_custom_call.1']
    #allocation4 [shape = 's32[1]{0}', space=sflag, size = 0x4, scoped, tag = 'scoped memory for tpu_custom_call.1']
    #allocation5 [shape = 'u8[512]{0}', space=vmem, size = 0x400, scoped, tag = 'output window, operand 0, single buffered']
    %6 = vsyncpa [#allocation4], 0
    %7 = vsyncpa [#allocation3], 0
    // Predicated region
    $region2: #{tpu_custom_call.1} parent=1 // pred_check
      _
    $region3: #{tpu_custom_call.1} parent=1 // pred_check_branch
      %9 = sbr.rel (0) target = $region5
    $region4: #{tpu_custom_call.1} parent=1 // pred_region
      %s11 = ssub.s32 32, 32
      %12 = vsyncadd [#allocation4], %s11
      %s14 = sshll.u32 %s0, 4
      %s15 = int_to_ptr.vmem [resolvable:$true] %s14
      %17 = dma.vmem_to_smem %s15, 32, [#allocation2], [#allocation4]
    $region5: #{tpu_custom_call.1} parent=1 // pred_fallthru
      _
    // Predicated region
    $region6: #{tpu_custom_call.1} parent=1 // pred_check
      _
    $region7: #{tpu_custom_call.1} parent=1 // pred_check_branch
      %19 = sbr.rel (0) target = $region9
    $region8: #{tpu_custom_call.1} parent=1 // pred_region
      %20 = dma.done [#allocation4], 32
    $region9: #{tpu_custom_call.1} parent=1 // pred_fallthru
      _
    %21 = sfence
    %s22 = sld [smem:[#allocation2]]
    %v23 = vstv %s22
    %v24 = vand.u32 2147483647, %v23
    %vm25 = vcmp.le.f32.partialorder %v24, 0.7853982
    %vm26 = vcmp.lt.s32.totalorder %v23, 0
    %v27 = vand.u32 %v23, 2139095040
    %v28 = vshrl.u32 %v27, 23
    %v29 = vsub.s32 %v28, 127
    %v30 = vand.u32 2147483647, %v23
    %v31 = vand.u32 %v30, 8388607
    %v32 = vor.u32 %v31, 8388608
    %v33 = vsub.s32 0, %v32
    %v34 = vadd.s32 %v29, 1
    %vm35 = vcmp.gt.s32.totalorder %v34, 0
    %v36 = vsel %vm35, %v34, 0
    %v37 = vshrl.u32 %v36, 5
    %v38 = vand.u32 %v36, 31
    %v39 = vsub.s32 32, %v38
    %v40 = vshrl.u32 683565275, %v39
    %v41 = vshll.u32 683565275, %v38
    %v42 = vshrl.u32 2475754826, %v39
    %v43 = vor.u32 %v41, %v42
    %v44 = vshll.u32 2475754826, %v38
    %v45 = vshrl.u32 2131351028, %v39
    %v46 = vor.u32 %v44, %v45
    %v47 = vshll.u32 2131351028, %v38
    %v48 = vshrl.u32 2102212464, %v39
    %v49 = vor.u32 %v47, %v48
    %v50 = vshll.u32 2102212464, %v38
    %v51 = vshrl.u32 920167782, %v39
    %v52 = vor.u32 %v50, %v51
    %v53 = vshll.u32 920167782, %v38
    %v54 = vshrl.u32 1326507024, %v39
    %v55 = vor.u32 %v53, %v54
    %vm56 = vcmp.lt.s32.totalorder %v37, 1
    %vm57 = vcmp.lt.s32.totalorder %v37, 2
    %vm58 = vcmp.lt.s32.totalorder %v37, 3
    %vm59 = vcmp.lt.s32.totalorder %v37, 4
    %v60 = vsel %vm56, %v40, %v43
    %v61 = vsel %vm59, %v49, 2102212464
    %v62 = vsel %vm58, %v46, %v61
    %v63 = vsel %vm57, %v60, %v62
    %v64 = vsel %vm56, %v43, %v46
    %v65 = vsel %vm59, %v52, 920167782
    %v66 = vsel %vm58, %v49, %v65
    %v67 = vsel %vm57, %v64, %v66
    %v68 = vsel %vm56, %v46, %v49
    %v69 = vsel %vm59, %v55, 1326507024
    %v70 = vsel %vm58, %v52, %v69
    %v71 = vsel %vm57, %v68, %v70
    %v72 = vshll.u32 %v32, 8
    %v73 = vmul.u32.u64.compose %v72, %v71
    %v74 = vextract.low.u32 %v73
    %v75 = vextract.high.u32 %v73
    %v76 = vmul.u32.u64.compose %v72, %v67
    %v77 = vextract.low.u32 %v76
    %v78 = vextract.high.u32 %v76
    %v79 = vmul.u32 %v72, %v63
    %v80 = vadd.s32 %v75, %v77
    %vm81 = vc.u32 %v75, %v77
    %v82 = vadd.s32 %v78, 1
    %v83 = vsel %vm81, %v82, %v78
    %v84 = vadd.s32 %v79, %v83
    %v85 = vadd.s32 %v84, 536870912
    %v86 = vshrl.u32 %v85, 30
    %v87 = vshll.u32 %v86, 30
    %v88 = vsub.s32 %v84, %v87
    %vm89 = vcmp.lt.s32.totalorder %v88, 0
    %v90 = vsub.s32 0, %v88
    %v91 = vsel %vm89, %v90, %v88
    %v92 = vclz %v91
    %v93 = vsub.s32 %v92, 2
    %vm94 = vcmp.gt.s32.totalorder 0, %v93
    %v95 = vsel %vm94, 0, %v93
    %v96 = vsub.s32 32, %v95
    %v97 = vshll.u32 %v88, %v95
    %v98 = vshrl.u32 %v80, %v96
    %v99 = vor.u32 %v97, %v98
    %v100 = vsub.s32 4294967266, %v95
    %v101 = vadd.s32 %v100, 127
    %v102 = vshll.u32 %v101, 23
    %v103 = vor.u32 4788187, %v102
    %v104 = vand.u32 2147483647, %v103
    %v106 = vcvt.s32.f32 %v99
    %v107 = vmul.f32 %v106, %v104
    %v108 = vxor.u32 %v107, 2147483648
    %v109 = vsel %vm26, %v108, %v107
    %v110 = vsub.s32 4, %v86
    %v111 = vsel %vm26, %v110, %v86
    %v112 = vsel %vm25, %v23, %v109
    %v113 = vsel %vm25, 0, %v111
    %v114 = vcosq.f32.pop %v112
    %v115 = vsinq.f32.pop %v112
    %vm116 = vweird.f32 %v23
    %v117 = vadd.s32 %v113, 3
    %v118 = vand.u32 %v117, 3
    %vm119 = vcmp.lt.s32.totalorder %v118, 2
    %vm120 = vcmp.eq.s32.totalorder %v118, 0
    %v121 = vxor.u32 %v115, 2147483648
    %v122 = vsel %vm120, %v114, %v121
    %vm123 = vcmp.eq.s32.totalorder %v118, 2
    %v124 = vxor.u32 %v114, 2147483648
    %v125 = vsel %vm123, %v124, %v115
    %v126 = vsel %vm119, %v122, %v125
    %v127 = vsel %vm116, nan, %v126
    %v128 = vadd.f32 %v127, 1.0
    %v129 = vmul.f32 %v128, 0.5
    %vm130 = vcmask 0
    %131 = vst.msk [vmem:[#allocation5] sm:$0x1] %vm130, %v129
    // Predicated region
    $region10: #{tpu_custom_call.1} parent=1 // pred_check
      _
    $region11: #{tpu_custom_call.1} parent=1 // pred_check_branch
      %133 = sbr.rel (0) target = $region13
    $region12: #{tpu_custom_call.1} parent=1 // pred_region
      %s135 = ssub.s32 16, 16
      %136 = vsyncadd [#allocation3], %s135
      %s138 = sshll.u32 [#allocation5], 4
      %s139 = int_to_ptr.vmem [resolvable:$true] %s138
      %141 = dma.vmem_to_hbm [thread:$0]  %s139, 16, %s1, [#allocation3]
    $region13: #{tpu_custom_call.1} parent=1 // pred_fallthru
      _
    // Predicated region
    $region14: #{tpu_custom_call.1} parent=1 // pred_check
      _
    $region15: #{tpu_custom_call.1} parent=1 // pred_check_branch
      %143 = sbr.rel (0) target = $region17
    $region16: #{tpu_custom_call.1} parent=1 // pred_region
      %144 = dma.done [#allocation3], 16
    $region17: #{tpu_custom_call.1} parent=1 // pred_fallthru
      _
    %145 = vsyncpa [#allocation3], 1
    %146 = vsyncpa [#allocation4], 1

</llo_original>
